<compile_context>
chip_gen: v7x
topology: tpu7x:2x2x1
jax: 0.10.0
libtpu: 0.0.40
codegen_flags: <defaults>
</compile_context>

<pallas_src>
import functools

import jax
import jax.numpy as jnp
from jax.experimental import pallas as pl
from jax.experimental.pallas import tpu as pltpu

BN_EPS = 1e-5                 # nn.BatchNorm2d default eps
LEAKY_SLOPE = 0.2             # nn.LeakyReLU(0.2)
TARGET_TILE_M = 16384         # lane-tile target (review: 8K-32K)
TILE_GRAIN = 512              # tile_m granularity (multiple of 128)
VMEM_LIMIT_BYTES = 32 * 1024 * 1024


def _round_up(x: int, k: int) -> int:
    return ((x + k - 1) // k) * k


def _choose_tiling(m_real: int, target_tile_m: int = TARGET_TILE_M):
    """Pick (num_cores, tile_m, tiles_per_core, m_pad).

    tile_m is made as large as possible (up to target) while keeping the
    padded-column waste to a few percent; a leading size-2 'parallel' grid
    axis lets v7x's two TensorCores split the work."""
    num_cores = 2 if m_real >= 2 * TILE_GRAIN else 1
    per_core = -(-m_real // num_cores)
    tile_m = max(min(target_tile_m, _round_up(per_core, TILE_GRAIN)), 128)
    while tile_m > TILE_GRAIN:
        pad = _round_up(m_real, num_cores * tile_m) - m_real
        if pad <= max(m_real // 16, TILE_GRAIN):
            break
        tile_m -= TILE_GRAIN
    m_pad = _round_up(m_real, num_cores * tile_m)
    tiles_per_core = m_pad // (num_cores * tile_m)
    return num_cores, tile_m, tiles_per_core, m_pad


# --------------------------------------------------------------------------
# Kernels.  All tensors are (C, TILE_M) tiles: channels on sublanes, pixels
# on lanes (lane-dense loads/stores).  (c, 1) vectors broadcast over lanes.
# --------------------------------------------------------------------------
def _lrelu(z):
    return jnp.maximum(z, LEAKY_SLOPE * z)


def _stats1_kernel(x_ref, w1_ref, sum_ref, ssq_ref):
    """Per-channel sum / sum-of-squares of y1 = W1 @ x (first block only).

    x is zero-padded past m_real, so padded columns contribute exactly 0 and
    no masking is needed."""
    j = pl.program_id(1)

    @pl.when(j == 0)
    def _():
        sum_ref[...] = jnp.zeros_like(sum_ref)
        ssq_ref[...] = jnp.zeros_like(ssq_ref)

    y1 = jnp.dot(w1_ref[...], x_ref[...], preferred_element_type=jnp.float32)
    sum_ref[...] += jnp.sum(y1, axis=1, keepdims=True)
    ssq_ref[...] += jnp.sum(y1 * y1, axis=1, keepdims=True)


def _stats2_kernel(x_ref, w1f_ref, t1_ref, w2_ref, sum_ref, ssq_ref,
                   *, m_real, tile_m, tiles_per_core, has_pad):
    """Per-channel sum / sum-of-squares of y2 = W2 @ lrelu(W1' @ x + t1)."""
    j = pl.program_id(1)

    @pl.when(j == 0)
    def _():
        sum_ref[...] = jnp.zeros_like(sum_ref)
        ssq_ref[...] = jnp.zeros_like(ssq_ref)

    y1 = jnp.dot(w1f_ref[...], x_ref[...], preferred_element_type=jnp.float32)
    z1 = _lrelu(y1 + t1_ref[...])                       # BN1 folded into w1f/t1
    y2 = jnp.dot(w2_ref[...], z1, preferred_element_type=jnp.float32)

    def acc(y):
        sum_ref[...] += jnp.sum(y, axis=1, keepdims=True)
        ssq_ref[...] += jnp.sum(y * y, axis=1, keepdims=True)

    if has_pad:
        start = (pl.program_id(0) * tiles_per_core + j) * tile_m

        @pl.when(start + tile_m > m_real)
        def _():  # only tiles containing padded columns pay the mask
            col = jax.lax.broadcasted_iota(jnp.int32, y2.shape, 1) + start
            acc(jnp.where(col < m_real, y2, 0.0))

        @pl.when(start + tile_m <= m_real)
        def _():
            acc(y2)
    else:
        acc(y2)


def _final_fused_kernel(x_ref, w1f_ref, t1_ref, w2f_ref, t2_ref, wn_ref,
                        o_ref, sum_ref, ssq_ref,
                        *, m_real, tile_m, tiles_per_core, has_pad):
    """conv1->BN1->lrelu->conv2->BN2->lrelu, plus the NEXT block's layer-1
    batch-statistics accumulation (sum/ssq of W1_next @ z2)."""
    j = pl.program_id(1)

    @pl.when(j == 0)
    def _():
        sum_ref[...] = jnp.zeros_like(sum_ref)
        ssq_ref[...] = jnp.zeros_like(ssq_ref)

    y1 = jnp.dot(w1f_ref[...], x_ref[...], preferred_element_type=jnp.float32)
    z1 = _lrelu(y1 + t1_ref[...])
    y2 = jnp.dot(w2f_ref[...], z1, preferred_element_type=jnp.float32)
    z2 = _lrelu(y2 + t2_ref[...])

    def emit(z):
        o_ref[...] = z.astype(o_ref.dtype)
        yn = jnp.dot(wn_ref[...], z, preferred_element_type=jnp.float32)
        sum_ref[...] += jnp.sum(yn, axis=1, keepdims=True)
        ssq_ref[...] += jnp.sum(yn * yn, axis=1, keepdims=True)

    if has_pad:
        start = (pl.program_id(0) * tiles_per_core + j) * tile_m

        @pl.when(start + tile_m > m_real)
        def _():  # zero pad columns so downstream statistics stay exact
            col = jax.lax.broadcasted_iota(jnp.int32, z2.shape, 1) + start
            emit(jnp.where(col < m_real, z2, 0.0))

        @pl.when(start + tile_m <= m_real)
        def _():
            emit(z2)
    else:
        emit(z2)


def _final_kernel(x_ref, w1f_ref, t1_ref, w2f_ref, t2_ref, o_ref):
    """Last block: conv1->BN1->lrelu->conv2->BN2->lrelu, no accumulators.
    Pad columns (if any) are sliced away in the wrapper, so no masking."""
    y1 = jnp.dot(w1f_ref[...], x_ref[...], preferred_element_type=jnp.float32)
    z1 = _lrelu(y1 + t1_ref[...])
    y2 = jnp.dot(w2f_ref[...], z1, preferred_element_type=jnp.float32)
    z2 = _lrelu(y2 + t2_ref[...])
    o_ref[...] = z2.astype(o_ref.dtype)


# --------------------------------------------------------------------------
# Wrapper
# --------------------------------------------------------------------------
def _fold_bn(ch_sum, ch_ssq, gamma, beta, m_real):
    """Per-channel sum / sum-of-squares -> folded BN scale & shift."""
    mean = ch_sum / m_real
    var = jnp.maximum(ch_ssq / m_real - mean * mean, 0.0)  # biased (train-mode)
    scale = gamma * jax.lax.rsqrt(var + BN_EPS)
    shift = beta - mean * scale
    return scale, shift


def conv_block_ker1x1_ker3x3_forward(x_nchw, params, target_tile_m=TARGET_TILE_M):
    """Forward pass of ConvBlockKer1x1Ker3x3 (1x1 convs preserve H, W)."""
    n, c, h, w = x_nchw.shape
    m_real = n * h * w
    # NCHW -> (C, N*H*W): channels on sublanes, pixels on lanes (lane-dense).
    xcm = jnp.transpose(x_nchw, (1, 0, 2, 3)).reshape(c, m_real)

    num_cores, tile_m, tiles_per_core, m_pad = _choose_tiling(m_real, target_tile_m)
    has_pad = m_pad != m_real
    if has_pad:
        xcm = jnp.pad(xcm, ((0, 0), (0, m_pad - m_real)))

    grid = (num_cores, tiles_per_core)
    cp_acc = pltpu.CompilerParams(dimension_semantics=("parallel", "arbitrary"),
                                  vmem_limit_bytes=VMEM_LIMIT_BYTES)
    cp_par = pltpu.CompilerParams(dimension_semantics=("parallel", "parallel"),
                                  vmem_limit_bytes=VMEM_LIMIT_BYTES)

    def cm_spec(ch):        # (ch, tile_m) streamed over the pixel axis
        return pl.BlockSpec((ch, tile_m),
                            lambda core, j: (0, core * tiles_per_core + j))

    def full_spec(shape):   # small weight / (c,1) vector, resident across grid
        nd = len(shape)
        return pl.BlockSpec(tuple(shape), lambda core, j: (0,) * nd)

    def acc_spec(ch):       # per-core partial accumulator (core axis squeezed)
        return pl.BlockSpec((None, ch, 1), lambda core, j: (core, 0, 0))

    def acc_shape(ch):
        return jax.ShapeDtypeStruct((num_cores, ch, 1), jnp.float32)

    nblocks = len(params)
    stats_kw = dict(m_real=m_real, tile_m=tile_m,
                    tiles_per_core=tiles_per_core, has_pad=has_pad)

    # ---- explicit layer-1 stats pass: ONLY for the first block (later blocks
    #      get their layer-1 stats fused into the previous final pass) ----
    w1_first = params[0][0][0]
    c1_first = w1_first.shape[0]
    sum1, ssq1 = pl.pallas_call(
        _stats1_kernel,
        grid=grid,
        in_specs=[cm_spec(xcm.shape[0]), full_spec(w1_first.shape)],
        out_specs=(acc_spec(c1_first), acc_spec(c1_first)),
        out_shape=(acc_shape(c1_first), acc_shape(c1_first)),
        compiler_params=cp_acc,
    )(xcm, w1_first)
    sum1, ssq1 = sum1.sum(axis=0), ssq1.sum(axis=0)

    for bi, ((w1, g1, b1), (w2, g2, b2)) in enumerate(params):
        cin = xcm.shape[0]
        c1, c2 = w1.shape[0], w2.shape[0]

        s1, t1 = _fold_bn(sum1, ssq1, g1, b1, m_real)
        w1f = w1 * s1                       # fold BN1 scale into conv1 weights

        # ---- layer-2 batch statistics (layer-1 intermediate stays in VMEM) ----
        sum2, ssq2 = pl.pallas_call(
            functools.partial(_stats2_kernel, **stats_kw),
            grid=grid,
            in_specs=[cm_spec(cin), full_spec(w1f.shape), full_spec(t1.shape),
                      full_spec(w2.shape)],
            out_specs=(acc_spec(c2), acc_spec(c2)),
            out_shape=(acc_shape(c2), acc_shape(c2)),
            compiler_params=cp_acc,
        )(xcm, w1f, t1, w2)
        sum2, ssq2 = sum2.sum(axis=0), ssq2.sum(axis=0)
        s2, t2 = _fold_bn(sum2, ssq2, g2, b2, m_real)
        w2f = w2 * s2                       # fold BN2 scale into conv2 weights

        if bi + 1 < nblocks:
            # ---- fused final pass + next block's layer-1 statistics ----
            wn = params[bi + 1][0][0]       # next block's conv1 weight (c1n, c2)
            c1n = wn.shape[0]
            xcm, sum1, ssq1 = pl.pallas_call(
                functools.partial(_final_fused_kernel, **stats_kw),
                grid=grid,
                in_specs=[cm_spec(cin), full_spec(w1f.shape), full_spec(t1.shape),
                          full_spec(w2f.shape), full_spec(t2.shape),
                          full_spec(wn.shape)],
                out_specs=(cm_spec(c2), acc_spec(c1n), acc_spec(c1n)),
                out_shape=(jax.ShapeDtypeStruct((c2, m_pad), jnp.float32),
                           acc_shape(c1n), acc_shape(c1n)),
                compiler_params=cp_acc,
            )(xcm, w1f, t1, w2f, t2, wn)
            sum1, ssq1 = sum1.sum(axis=0), ssq1.sum(axis=0)
        else:
            # ---- last block: plain fused final pass ----
            xcm = pl.pallas_call(
                _final_kernel,
                grid=grid,
                in_specs=[cm_spec(cin), full_spec(w1f.shape), full_spec(t1.shape),
                          full_spec(w2f.shape), full_spec(t2.shape)],
                out_specs=cm_spec(c2),
                out_shape=jax.ShapeDtypeStruct((c2, m_pad), jnp.float32),
                compiler_params=cp_par,
            )(xcm, w1f, t1, w2f, t2)

    cout = xcm.shape[0]
    out = xcm[:, :m_real].reshape(cout, n, h, w)
    return jnp.transpose(out, (1, 0, 2, 3))


def init_params(key, in_chs, l1_out_chs, l2_out_chs, total_blocks):
    """Conv weights stored as (out, in) (matching PyTorch (out,in,1,1));
    BN gamma=1, beta=0 (PyTorch defaults), stored as (C, 1)."""
    params = []
    c = in_chs
    for _ in range(total_blocks):
        key, k1, k2 = jax.random.split(key, 3)
        w1 = jax.random.normal(k1, (l1_out_chs, c), jnp.float32) * 0.1
        g1 = jnp.ones((l1_out_chs, 1), jnp.float32)
        b1 = jnp.zeros((l1_out_chs, 1), jnp.float32)
        w2 = jax.random.normal(k2, (l2_out_chs, l1_out_chs), jnp.float32) * 0.1
        g2 = jnp.ones((l2_out_chs, 1), jnp.float32)
        b2 = jnp.zeros((l2_out_chs, 1), jnp.float32)
        params.append(((w1, g1, b1), (w2, g2, b2)))
        c = l2_out_chs
    return params


# --------------------------------------------------------------------------
# Pure-JAX reference (same train-mode BN semantics) for correctness check.
# --------------------------------------------------------------------------
def _reference_forward(x_nchw, params):
    n, c, h, w = x_nchw.shape
    x = jnp.transpose(x_nchw, (1, 0, 2, 3)).reshape(c, -1)
    for layer_pair in params:
        for (wk, gk, bk) in layer_pair:
            y = wk @ x
            mean = jnp.mean(y, axis=1, keepdims=True)
            var = jnp.mean((y - mean) ** 2, axis=1, keepdims=True)
            z = (y - mean) * jax.lax.rsqrt(var + BN_EPS) * gk + bk
            x = jnp.where(z >= 0, z, LEAKY_SLOPE * z)
    cout = x.shape[0]
    return jnp.transpose(x.reshape(cout, n, h, w), (1, 0, 2, 3))


if __name__ == "__main__":
    key = jax.random.PRNGKey(0)
    kx, kp = jax.random.split(key)

    batch, in_chs, h, w = 2, 4, 16, 16          # M = N*H*W = 512
    l1_out_chs, l2_out_chs, total_blocks = 8, 16, 2

    x = jax.random.normal(kx, (batch, in_chs, h, w), jnp.float32)
    params = init_params(kp, in_chs, l1_out_chs, l2_out_chs, total_blocks)

    out = conv_block_ker1x1_ker3x3_forward(x, params)
    out = jax.block_until_ready(out)

    assert out.shape == (batch, l2_out_chs, h, w), out.shape
    assert bool(jnp.all(jnp.isfinite(out)))

    ref = _reference_forward(x, params)
    max_err = float(jnp.max(jnp.abs(out - ref)))
    assert bool(jnp.allclose(out, ref, atol=2e-3, rtol=2e-3)), max_err

    # Exercise a padded / multi-tile / multi-core configuration as well.
    x2 = jax.random.normal(kx, (3, in_chs, 20, 20), jnp.float32)   # M = 1200
    out2 = jax.block_until_ready(conv_block_ker1x1_ker3x3_forward(x2, params))
    ref2 = _reference_forward(x2, params)
    assert bool(jnp.allclose(out2, ref2, atol=2e-3, rtol=2e-3))

    print("KERNEL_OK")
</pallas_src>

<mosaic_0001>
module attributes {stable_mosaic.version = 11 : i64} {
  func.func @_stats1_kernel(%arg0: i32, %arg1: i32, %arg2: memref<4x512xf32, #tpu.memory_space<vmem>>, %arg3: memref<8x4xf32, #tpu.memory_space<vmem>>, %arg4: memref<1x8x1xf32, #tpu.memory_space<vmem>>, %arg5: memref<1x8x1xf32, #tpu.memory_space<vmem>>) attributes {dimension_semantics = [#tpu.dimension_semantics<parallel>, #tpu.dimension_semantics<arbitrary>], iteration_bounds = array<i64: 1, 1>, scalar_prefetch = 0 : i64, scratch_operands = 0 : i64, tpu.core_type = #tpu.core_type<tc>, window_params = [{transform_indices = @transform_0, window_bounds = array<i64: 4, 512>}, {pipeline_mode = #tpu.pipeline_mode<synchronous>, transform_indices = @transform_1, window_bounds = array<i64: 8, 4>}, {transform_indices = @transform_2, window_bounds = array<i64: 1, 8, 1>}, {transform_indices = @transform_3, window_bounds = array<i64: 1, 8, 1>}]} {
    %c0_i32 = arith.constant 0 : i32
    %0 = arith.cmpi eq, %arg1, %c0_i32 : i32
    %1 = arith.extui %0 : i1 to i32
    %c0_i32_0 = arith.constant 0 : i32
    %2 = arith.cmpi ne, %1, %c0_i32_0 : i32
    scf.if %2 {
      %cst_18 = arith.constant 0.000000e+00 : f32
      %23 = vector.broadcast %cst_18 : f32 to vector<8x1xf32>
      %c0_19 = arith.constant 0 : index
      %c0_20 = arith.constant 0 : index
      %c0_21 = arith.constant 0 : index
      %24 = vector.load %arg4[%c0_19, %c0_20, %c0_21] : memref<1x8x1xf32, #tpu.memory_space<vmem>>, vector<1x8x1xf32>
      %25 = vector.shape_cast %24 : vector<1x8x1xf32> to vector<8x1xf32>
      %26 = vector.shape_cast %23 : vector<8x1xf32> to vector<1x8x1xf32>
      tpu.vector_store %arg4[%c0_19, %c0_20, %c0_21], %26 {strides = array<i32>} : memref<1x8x1xf32, #tpu.memory_space<vmem>>, vector<1x8x1xf32>,
      %cst_22 = arith.constant 0.000000e+00 : f32
      %27 = vector.broadcast %cst_22 : f32 to vector<8x1xf32>
      %c0_23 = arith.constant 0 : index
      %c0_24 = arith.constant 0 : index
      %c0_25 = arith.constant 0 : index
      %28 = vector.load %arg5[%c0_23, %c0_24, %c0_25] : memref<1x8x1xf32, #tpu.memory_space<vmem>>, vector<1x8x1xf32>
      %29 = vector.shape_cast %28 : vector<1x8x1xf32> to vector<8x1xf32>
      %30 = vector.shape_cast %27 : vector<8x1xf32> to vector<1x8x1xf32>
      tpu.vector_store %arg5[%c0_23, %c0_24, %c0_25], %30 {strides = array<i32>} : memref<1x8x1xf32, #tpu.memory_space<vmem>>, vector<1x8x1xf32>,
    } else {
    }
    %c0 = arith.constant 0 : index
    %c0_1 = arith.constant 0 : index
    %3 = vector.load %arg3[%c0, %c0_1] : memref<8x4xf32, #tpu.memory_space<vmem>>, vector<8x4xf32>
    %c0_2 = arith.constant 0 : index
    %c0_3 = arith.constant 0 : index
    %4 = vector.load %arg2[%c0_2, %c0_3] : memref<4x512xf32, #tpu.memory_space<vmem>>, vector<4x512xf32>
    %cst = arith.constant dense<0.000000e+00> : vector<8x512xf32>
    %5 = tpu.matmul %3, %4, %cst {dimension_numbers = #tpu.dot_dimension_numbers<[1], [0], [0], [1], [0, 0, 1, 1], [], []>} : vector<8x4xf32>, vector<4x512xf32>, vector<8x512xf32> -> vector<8x512xf32>
    %c0_4 = arith.constant 0 : index
    %c0_5 = arith.constant 0 : index
    %c0_6 = arith.constant 0 : index
    %6 = vector.load %arg4[%c0_4, %c0_5, %c0_6] : memref<1x8x1xf32, #tpu.memory_space<vmem>>, vector<1x8x1xf32>
    %7 = vector.shape_cast %6 : vector<1x8x1xf32> to vector<8x1xf32>
    %cst_7 = arith.constant dense<0.000000e+00> : vector<8xf32>
    %8 = vector.multi_reduction <add>, %5, %cst_7 [1] : vector<8x512xf32> to vector<8xf32>
    %9 = vector.shape_cast %8 : vector<8xf32> to vector<8x1xf32>
    %10 = arith.addf %7, %9 : vector<8x1xf32>
    %c0_8 = arith.constant 0 : index
    %c0_9 = arith.constant 0 : index
    %c0_10 = arith.constant 0 : index
    %11 = vector.load %arg4[%c0_8, %c0_9, %c0_10] : memref<1x8x1xf32, #tpu.memory_space<vmem>>, vector<1x8x1xf32>
    %12 = vector.shape_cast %11 : vector<1x8x1xf32> to vector<8x1xf32>
    %13 = vector.shape_cast %10 : vector<8x1xf32> to vector<1x8x1xf32>
    tpu.vector_store %arg4[%c0_8, %c0_9, %c0_10], %13 {strides = array<i32>} : memref<1x8x1xf32, #tpu.memory_space<vmem>>, vector<1x8x1xf32>,
    %c0_11 = arith.constant 0 : index
    %c0_12 = arith.constant 0 : index
    %c0_13 = arith.constant 0 : index
    %14 = vector.load %arg5[%c0_11, %c0_12, %c0_13] : memref<1x8x1xf32, #tpu.memory_space<vmem>>, vector<1x8x1xf32>
    %15 = vector.shape_cast %14 : vector<1x8x1xf32> to vector<8x1xf32>
    %16 = arith.mulf %5, %5 : vector<8x512xf32>
    %cst_14 = arith.constant dense<0.000000e+00> : vector<8xf32>
    %17 = vector.multi_reduction <add>, %16, %cst_14 [1] : vector<8x512xf32> to vector<8xf32>
    %18 = vector.shape_cast %17 : vector<8xf32> to vector<8x1xf32>
    %19 = arith.addf %15, %18 : vector<8x1xf32>
    %c0_15 = arith.constant 0 : index
    %c0_16 = arith.constant 0 : index
    %c0_17 = arith.constant 0 : index
    %20 = vector.load %arg5[%c0_15, %c0_16, %c0_17] : memref<1x8x1xf32, #tpu.memory_space<vmem>>, vector<1x8x1xf32>
    %21 = vector.shape_cast %20 : vector<1x8x1xf32> to vector<8x1xf32>
    %22 = vector.shape_cast %19 : vector<8x1xf32> to vector<1x8x1xf32>
    tpu.vector_store %arg5[%c0_15, %c0_16, %c0_17], %22 {strides = array<i32>} : memref<1x8x1xf32, #tpu.memory_space<vmem>>, vector<1x8x1xf32>,
    return
  }
  func.func @transform_0(%arg0: i32, %arg1: i32) -> (i32, i32) {
    %c1_i32 = arith.constant 1 : i32
    %0 = arith.muli %arg0, %c1_i32 : i32
    %1 = arith.addi %0, %arg1 : i32
    %c0_i32 = arith.constant 0 : i32
    %c0_i32_0 = arith.constant 0 : i32
    return %c0_i32, %1 : i32, i32
  }
  func.func @transform_1(%arg0: i32, %arg1: i32) -> (i32, i32) {
    %c0_i32 = arith.constant 0 : i32
    %c0_i32_0 = arith.constant 0 : i32
    %c0_i32_1 = arith.constant 0 : i32
    return %c0_i32, %c0_i32_0 : i32, i32
  }
  func.func @transform_2(%arg0: i32, %arg1: i32) -> (i32, i32, i32) {
    %c0_i32 = arith.constant 0 : i32
    %c0_i32_0 = arith.constant 0 : i32
    %c0_i32_1 = arith.constant 0 : i32
    return %arg0, %c0_i32, %c0_i32_0 : i32, i32, i32
  }
  func.func @transform_3(%arg0: i32, %arg1: i32) -> (i32, i32, i32) {
    %c0_i32 = arith.constant 0 : i32
    %c0_i32_0 = arith.constant 0 : i32
    %c0_i32_1 = arith.constant 0 : i32
    return %arg0, %c0_i32, %c0_i32_0 : i32, i32, i32
  }
}

</mosaic_0001>

<llo_original>
// kernel: tpu_custom_call.1
$region0: #{tpu_custom_call.1}
  #allocation0 [shape = 'u32[]', space=smem, size = 0x4, offset = 0x4, fixed_abs, tag = 'smem constant byte address 0x4 - core index']
  #allocation1 [shape = 'u32[144,128]{1,0:T(1,128)}', space=vmem, size = 0x12000, scoped, tag = 'internal scratch']
  %s0 = inlined_call_operand.hbm [shape: f32[4,512], index: 0, kind: input, shape index: {}]
  %s1 = inlined_call_operand.vmem [shape: f32[8,4], index: 1, kind: input, shape index: {}]
  %s2 = inlined_call_operand.vmem [shape: f32[1,8,1], index: 2, kind: output, shape index: {0}]
  %s3 = inlined_call_operand.vmem [shape: f32[1,8,1], index: 3, kind: output, shape index: {1}]
  %4 = xla_tuple %s2, %s3
  %s5 = sld [smem:[#allocation0]]
  $region34: #{tpu_custom_call.1} parent=0
    _
  %s7 = ssub.s32 1, %s5
  %s8 = scalar_select 0, %s7, %s5
  $region1: #{tpu_custom_call.1} parent=0
    #allocation2 [shape = 'u8[8192]{0}', space=vmem, size = 0x2000, scoped, tag = 'input window, operand 0, single buffered']
    #allocation3 [shape = 's32[1]{0}', space=sflag, size = 0x4, scoped, tag = 'scoped memory for tpu_custom_call.1']
    %9 = vsyncpa [#allocation3], 0
    // Predicated region
    $region2: #{tpu_custom_call.1} parent=1 // pred_check
      _
    $region3: #{tpu_custom_call.1} parent=1 // pred_check_branch
      %11 = sbr.rel (0) target = $region5
    $region4: #{tpu_custom_call.1} parent=1 // pred_region
      %s12 = sadd.s32 0, 0
      %s13 = smul.u32 4, %s12
      %s15 = ssub.s32 256, 256
      %16 = vsyncadd [#allocation3], %s15
      %s17 = smul.addr %s13, 64
      %s18 = scalar_lea.hbm %s0, %s17
      %s20 = sshll.u32 [#allocation2], 4
      %s21 = int_to_ptr.vmem [resolvable:$true] %s20
      %23 = dma.hbm_to_vmem [thread:$0]  %s18, 256, %s21, [#allocation3]
    $region5: #{tpu_custom_call.1} parent=1 // pred_fallthru
      _
    // Predicated region
    $region6: #{tpu_custom_call.1} parent=1 // pred_check
      _
    $region7: #{tpu_custom_call.1} parent=1 // pred_check_branch
      %25 = sbr.rel (0) target = $region9
    $region8: #{tpu_custom_call.1} parent=1 // pred_region
      _
    $region9: #{tpu_custom_call.1} parent=1 // pred_fallthru
      _
    // Predicated region
    $region10: #{tpu_custom_call.1} parent=1 // pred_check
      _
    $region11: #{tpu_custom_call.1} parent=1 // pred_check_branch
      %27 = sbr.rel (0) target = $region13
    $region12: #{tpu_custom_call.1} parent=1 // pred_region
      %28 = dma.done [#allocation3], 256
    $region13: #{tpu_custom_call.1} parent=1 // pred_fallthru
      _
    %s29 = sadd.s32 0, 0
    %s30 = smul.u32 4, %s29
    %p31 = scmp.eq.s32.totalorder 0, 0
    // Predicated region
    $region14: #{tpu_custom_call.1} parent=1 // pred_check
      %p32 = pneg %p31
    $region15: #{tpu_custom_call.1} parent=1 // pred_check_branch
      %34 = sbr.rel (%p32) target = $region17
    $region16: #{tpu_custom_call.1} parent=1 // pred_region
      %vm35 = vcmask 7168
      %36 = vst.msk [vmem:[%s2] sm:$0xff] %vm35, 0.0
      %37 = vst.msk [vmem:[%s3] sm:$0xff] %vm35, 0.0
    $region17: #{tpu_custom_call.1} parent=1 // pred_fallthru
      _
    %v38 = vld [vmem:[%s1] sm:$0xff]
    %v39 = vld [vmem:[#allocation2] sm:$0xff]
    %v40 = vld [vmem:[#allocation2 + $0x8] sm:$0xff]
    %v43 = vcombine.high %v39, %v39
    %v44 = vcombine.high %v40, %v40
    %vm45 = vcmask 31744
    %v47 = vsel %vm45, %v38, 0
    %vm49 = vcmask 1043456
    %v50 = vsel %vm49, %v39, 0
    %v52 = vsel %vm49, %v43, 0
    %v54 = vsel %vm49, %v40, 0
    %v56 = vsel %vm49, %v44, 0
    %58 = vmatprep.subr.mxu0 %v52
    %59 = vmatpush1.msra.mxu0 %v50
    %60 = vmatprep.subr.mxu0 0.0
    %61 = vmatpush1.msra.mxu0 0.0
    %62 = vmatprep.subr.mxu0 0.0
    %63 = vmatpush1.msra.mxu0 0.0
    %64 = vmatprep.subr.mxu0 0.0
    %65 = vmatpush1.msra.mxu0 0.0
    %66 = vmatprep.subr.mxu0 0.0
    %67 = vmatpush1.msra.mxu0 0.0
    %68 = vmatprep.subr.mxu0 0.0
    %69 = vmatpush1.msra.mxu0 0.0
    %70 = vmatprep.subr.mxu0 0.0
    %71 = vmatpush1.msra.mxu0 0.0
    %72 = vmatprep.subr.mxu0 0.0
    %73 = vmatpush1.msra.mxu0 0.0
    %74 = vmatprep.subr.mxu0 0.0
    %75 = vmatpush1.msra.mxu0 0.0
    %76 = vmatprep.subr.mxu0 0.0
    %77 = vmatpush1.msra.mxu0 0.0
    %78 = vmatprep.subr.mxu0 0.0
    %79 = vmatpush1.msra.mxu0 0.0
    %80 = vmatprep.subr.mxu0 0.0
    %81 = vmatpush1.msra.mxu0 0.0
    %82 = vmatprep.subr.mxu0 0.0
    %83 = vmatpush1.msra.mxu0 0.0
    %84 = vmatprep.subr.mxu0 0.0
    %85 = vmatpush1.msra.mxu0 0.0
    %86 = vmatprep.subr.mxu0 0.0
    %87 = vmatpush1.msra.mxu0 0.0
    %88 = vmatprep.subr.mxu0 0.0
    %89 = vmatpush1.msra.mxu0 0.0
    %90 = vmatprep.subr.mxu0 0.0
    %91 = vmatpush1.msra.mxu0 0.0
    %92 = vmatprep.subr.mxu0 0.0
    %93 = vmatpush1.msra.mxu0 0.0
    %94 = vmatprep.subr.mxu0 0.0
    %95 = vmatpush1.msra.mxu0 0.0
    %96 = vmatprep.subr.mxu0 0.0
    %97 = vmatpush1.msra.mxu0 0.0
    %98 = vmatprep.subr.mxu0 0.0
    %99 = vmatpush1.msra.mxu0 0.0
    %100 = vmatprep.subr.mxu0 0.0
    %101 = vmatpush1.msra.mxu0 0.0
    %102 = vmatprep.subr.mxu0 0.0
    %103 = vmatpush1.msra.mxu0 0.0
    %104 = vmatprep.subr.mxu0 0.0
    %105 = vmatpush1.msra.mxu0 0.0
    %106 = vmatprep.subr.mxu0 0.0
    %107 = vmatpush1.msra.mxu0 0.0
    %108 = vmatprep.subr.mxu0 0.0
    %109 = vmatpush1.msra.mxu0 0.0
    %110 = vmatprep.subr.mxu0 0.0
    %111 = vmatpush1.msra.mxu0 0.0
    %112 = vmatprep.subr.mxu0 0.0
    %113 = vmatpush1.msra.mxu0 0.0
    %114 = vmatprep.subr.mxu0 0.0
    %115 = vmatpush1.msra.mxu0 0.0
    %116 = vmatprep.subr.mxu0 0.0
    %117 = vmatpush1.msra.mxu0 0.0
    %118 = vmatprep.subr.mxu0 0.0
    %119 = vmatpush1.msra.mxu0 0.0
    %120 = vmatprep.subr.mxu0 0.0
    %121 = vmatpush1.msra.mxu0 0.0
    %122 = vmatprep.mubr.f32.mxu0 0.0
    %123 = vmatmul.mubr.f32.gmra.mrb[0].mxu0 %v47
    %v124 = vpop.f32.mrb[0].mxu0
    %v125 = vadd.f32 0.0, %v124
    %v126 = vpop.f32.mrb[0].mxu0
    %v127 = vadd.f32 0.0, %v126
    %128 = vdwg.mxu0
    %129 = vmatprep.subr.mxu0 %v56
    %130 = vmatpush1.msra.mxu0 %v54
    %131 = vmatprep.subr.mxu0 0.0
    %132 = vmatpush1.msra.mxu0 0.0
    %133 = vmatprep.subr.mxu0 0.0
    %134 = vmatpush1.msra.mxu0 0.0
    %135 = vmatprep.subr.mxu0 0.0
    %136 = vmatpush1.msra.mxu0 0.0
    %137 = vmatprep.subr.mxu0 0.0
    %138 = vmatpush1.msra.mxu0 0.0
    %139 = vmatprep.subr.mxu0 0.0
    %140 = vmatpush1.msra.mxu0 0.0
    %141 = vmatprep.subr.mxu0 0.0
    %142 = vmatpush1.msra.mxu0 0.0
    %143 = vmatprep.subr.mxu0 0.0
    %144 = vmatpush1.msra.mxu0 0.0
    %145 = vmatprep.subr.mxu0 0.0
    %146 = vmatpush1.msra.mxu0 0.0
    %147 = vmatprep.subr.mxu0 0.0
    %148 = vmatpush1.msra.mxu0 0.0
    %149 = vmatprep.subr.mxu0 0.0
    %150 = vmatpush1.msra.mxu0 0.0
    %151 = vmatprep.subr.mxu0 0.0
    %152 = vmatpush1.msra.mxu0 0.0
    %153 = vmatprep.subr.mxu0 0.0
    %154 = vmatpush1.msra.mxu0 0.0
    %155 = vmatprep.subr.mxu0 0.0
    %156 = vmatpush1.msra.mxu0 0.0
    %157 = vmatprep.subr.mxu0 0.0
    %158 = vmatpush1.msra.mxu0 0.0
    %159 = vmatprep.subr.mxu0 0.0
    %160 = vmatpush1.msra.mxu0 0.0
    %161 = vmatprep.subr.mxu0 0.0
    %162 = vmatpush1.msra.mxu0 0.0
    %163 = vmatprep.subr.mxu0 0.0
    %164 = vmatpush1.msra.mxu0 0.0
    %165 = vmatprep.subr.mxu0 0.0
    %166 = vmatpush1.msra.mxu0 0.0
    %167 = vmatprep.subr.mxu0 0.0
    %168 = vmatpush1.msra.mxu0 0.0
    %169 = vmatprep.subr.mxu0 0.0
    %170 = vmatpush1.msra.mxu0 0.0
    %171 = vmatprep.subr.mxu0 0.0
    %172 = vmatpush1.msra.mxu0 0.0
    %173 = vmatprep.subr.mxu0 0.0
    %174 = vmatpush1.msra.mxu0 0.0
    %175 = vmatprep.subr.mxu0 0.0
    %176 = vmatpush1.msra.mxu0 0.0
    %177 = vmatprep.subr.mxu0 0.0
    %178 = vmatpush1.msra.mxu0 0.0
    %179 = vmatprep.subr.mxu0 0.0
    %180 = vmatpush1.msra.mxu0 0.0
    %181 = vmatprep.subr.mxu0 0.0
    %182 = vmatpush1.msra.mxu0 0.0
    %183 = vmatprep.subr.mxu0 0.0
    %184 = vmatpush1.msra.mxu0 0.0
    %185 = vmatprep.subr.mxu0 0.0
    %186 = vmatpush1.msra.mxu0 0.0
    %187 = vmatprep.subr.mxu0 0.0
    %188 = vmatpush1.msra.mxu0 0.0
    %189 = vmatprep.subr.mxu0 0.0
    %190 = vmatpush1.msra.mxu0 0.0
    %191 = vmatprep.subr.mxu0 0.0
    %192 = vmatpush1.msra.mxu0 0.0
    %193 = vmatprep.mubr.f32.mxu0 0.0
    %194 = vmatmul.mubr.f32.gmra.mrb[0].mxu0 %v47
    %v195 = vpop.f32.mrb[0].mxu0
    %v196 = vadd.f32 0.0, %v195
    %v197 = vpop.f32.mrb[0].mxu0
    %v198 = vadd.f32 0.0, %v197
    %199 = vdwg.mxu0
    %v200 = vld [vmem:[%s2] sm:$0xff]
    %v201 = vadd.f32 %v125, %v127
    %v202 = vadd.f32 %v201, %v196
    %v203 = vadd.f32 %v202, %v198
    %204 = vadd.xlane.f32.xlu0 %v203
    %v205 = vpop.xlane.xlu0 %204
    %v206 = vadd.f32 %v200, %v205
    %vm207 = vcmask 7168
    %208 = vst.msk [vmem:[%s2] sm:$0xff] %vm207, %v206
    %v209 = vld [vmem:[%s3] sm:$0xff]
    %v210 = vmul.f32 %v125, %v125
    %v211 = vmul.f32 %v127, %v127
    %v212 = vmul.f32 %v196, %v196
    %v213 = vmul.f32 %v198, %v198
    %v214 = vadd.f32 %v210, %v211
    %v215 = vadd.f32 %v214, %v212
    %v216 = vadd.f32 %v215, %v213
    %217 = vadd.xlane.f32.xlu0 %v216
    %v218 = vpop.xlane.xlu0 %217
    %v219 = vadd.f32 %v209, %v218
    %220 = vst.msk [vmem:[%s3] sm:$0xff] %vm207, %v219
    // Predicated region
    $region18: #{tpu_custom_call.1} parent=1 // pred_check
      _
    $region19: #{tpu_custom_call.1} parent=1 // pred_check_branch
      %222 = sbr.rel (0) target = $region21
    $region20: #{tpu_custom_call.1} parent=1 // pred_region
      _
    $region21: #{tpu_custom_call.1} parent=1 // pred_fallthru
      _
    // Predicated region
    $region22: #{tpu_custom_call.1} parent=1 // pred_check
      _
    $region23: #{tpu_custom_call.1} parent=1 // pred_check_branch
      %224 = sbr.rel (0) target = $region25
    $region24: #{tpu_custom_call.1} parent=1 // pred_region
      _
    $region25: #{tpu_custom_call.1} parent=1 // pred_fallthru
      _
    // Predicated region
    $region26: #{tpu_custom_call.1} parent=1 // pred_check
      _
    $region27: #{tpu_custom_call.1} parent=1 // pred_check_branch
      %226 = sbr.rel (0) target = $region29
    $region28: #{tpu_custom_call.1} parent=1 // pred_region
      _
    $region29: #{tpu_custom_call.1} parent=1 // pred_fallthru
      _
    // Predicated region
    $region30: #{tpu_custom_call.1} parent=1 // pred_check
      _
    $region31: #{tpu_custom_call.1} parent=1 // pred_check_branch
      %228 = sbr.rel (0) target = $region33
    $region32: #{tpu_custom_call.1} parent=1 // pred_region
      _
    $region33: #{tpu_custom_call.1} parent=1 // pred_fallthru
      _
    %229 = vsyncpa [#allocation3], 1

</llo_original>
